<compile_context>
chip_gen: v7x
topology: tpu7x:2x2x1
jax: 0.10.0
libtpu: 0.0.40
codegen_flags: <defaults>
</compile_context>

<pallas_src>
import math

import jax
import jax.numpy as jnp
from jax.experimental import pallas as pl
from jax.experimental.pallas import tpu as pltpu


def _round_up(a: int, b: int) -> int:
    return ((a + b - 1) // b) * b


def _vmem_cap_bytes() -> int:
    """Generation-aware VMEM ceiling (~75% of physical: 48 MiB v7x, 96 MiB v5e/v6e)."""
    try:
        return int(0.75 * pltpu.get_tpu_info().vmem_capacity_bytes)
    except Exception:
        return 48 * 1024 * 1024  # conservative (v7x-sized) fallback


# --------------------- batch-on-lanes (x^T) kernels: dim < 128 ----------------
def _linear_colmajor_kernel(xT_ref, w_ref, b_ref, o_ref):
    # xT_ref: (dim, tile_n); w_ref: (dim, 1) f32; b_ref: (1,) f32 in SMEM
    xT = xT_ref[...].astype(jnp.float32)
    z = jnp.sum(xT * w_ref[...], axis=0, keepdims=True) + b_ref[0]      # (1, tile_n)
    o_ref[...] = jax.nn.sigmoid(z).astype(o_ref.dtype)


def _quadratic_colmajor_kernel(xT_ref, m_ref, w_ref, b_ref, o_ref):
    # xT_ref: (dim, tile_n); m_ref: (dim, dim) f32; w_ref: (dim, 1) f32
    xT = xT_ref[...]
    # (Mx + w): one lane-full MXU matmul; linear term fused as a VPU add.
    mxw = jnp.dot(m_ref[...], xT, preferred_element_type=jnp.float32) + w_ref[...]
    # rowwise x^T M x + w.x  ==  sublane reduce of x * (Mx + w)
    z = jnp.sum(xT.astype(jnp.float32) * mxw, axis=0, keepdims=True) + b_ref[0]
    o_ref[...] = jax.nn.sigmoid(z).astype(o_ref.dtype)


# ----------------- row-major kernels: dim >= 128 (no wrapper x.T) -------------
def _linear_rowmajor_kernel(x_ref, w_ref, b_ref, o_ref):
    # x_ref: (tile_m, dim); w_ref: (1, dim) f32
    x = x_ref[...].astype(jnp.float32)
    z = jnp.sum(x * w_ref[...], axis=1, keepdims=True) + b_ref[0]        # (tile_m, 1)
    o_ref[...] = jax.nn.sigmoid(z).astype(o_ref.dtype)


def _quadratic_rowmajor_kernel(x_ref, m_ref, w_ref, b_ref, o_ref):
    # x_ref: (tile_m, dim); m_ref: (dim, dim) f32 symmetric; w_ref: (1, dim) f32
    x = x_ref[...]
    xmw = jnp.dot(x, m_ref[...], preferred_element_type=jnp.float32) + w_ref[...]
    z = jnp.sum(x.astype(jnp.float32) * xmw, axis=1, keepdims=True) + b_ref[0]
    o_ref[...] = jax.nn.sigmoid(z).astype(o_ref.dtype)


# --------------------------------- glue ---------------------------------------
def _build_quadratic_matrix(weight, dim):
    """Symmetric M with M[i,j]=0.5*w_pair (i<j), M[i,i]=w_sq[i]; kept in f32."""
    n_pairs = dim * (dim - 1) // 2
    w_pair = weight[0, dim:dim + n_pairs].astype(jnp.float32)
    w_sq = weight[0, dim + n_pairs:dim + n_pairs + dim].astype(jnp.float32)
    iu = jnp.triu_indices(dim, k=1)  # row-major (i, j>i) == PyTorch loop order
    M = jnp.zeros((dim, dim), jnp.float32).at[iu].set(0.5 * w_pair)
    return M + M.T + jnp.diag(w_sq)


def logistic_forward(x, weight, bias, quadratic_features=False,
                     x_is_transposed=False, tile=None):
    """Forward pass of LogisticModel: sigmoid(Linear(processor(x))).

    x       : [N, dim]   (or [dim, N] with x_is_transposed=True, skipping the
              wrapper-side transpose)
    weight  : [1, F] with F = dim, or dim + dim*(dim-1)//2 + dim (quadratic)
    bias    : [1]
    returns : [N, 1] probabilities in x.dtype
    """
    if x_is_transposed:
        dim, N = x.shape
    else:
        N, dim = x.shape
    itemsize = jnp.dtype(x.dtype).itemsize

    w_lin = weight[0, :dim].astype(jnp.float32)
    b = bias.reshape(1).astype(jnp.float32)
    M = _build_quadratic_matrix(weight, dim) if quadratic_features else None

    vmem_cap = _vmem_cap_bytes()
    # Grid-invariant residents (single-buffered via pl.Buffered(1)): M + w, f32.
    fixed_bytes = (dim * dim * 4 if quadratic_features else 0) + dim * 4
    # Per-buffer budget for the pipelined x tile: honest about the 2x double
    # buffer, 2x headroom, ~4 MiB margin for output buffers / internal scratch.
    per_buf_budget = max(1 << 20, min(8 << 20, (vmem_cap - fixed_bytes - (4 << 20)) // 4))

    use_colmajor = x_is_transposed or dim < 128

    if use_colmajor:
        # Batch on the LANE axis: lane-full vregs even for tiny dim, and a
        # lane-dense (1, tile_n) output slab (no masked stores).
        cap = max(128, (per_buf_budget // max(1, dim * itemsize)) // 128 * 128)
        tile_n = int(min(65536, cap)) if tile is None else int(tile)
        # Megacore (v7x has 2 TCs): prefer >= 2 balanced grid steps when N allows.
        if tile is None and N >= 256 and _round_up(N, 128) <= tile_n:
            tile_n = _round_up((N + 1) // 2, 128)
        tile_n = max(128, min(tile_n, _round_up(N, 128)))
        assert tile_n % 128 == 0
        N_pad = _round_up(N, tile_n)

        if x_is_transposed:
            x_arg = x if N_pad == N else jnp.pad(x, ((0, 0), (0, N_pad - N)))
        else:
            # Single fused XLA pad+transpose.
            # TODO(synk): callers that keep activations in (dim, N) layout should
            # pass x_is_transposed=True and skip this extra HBM round trip.
            x_arg = jnp.pad(x, ((0, N_pad - N), (0, 0))).T

        grid = (N_pad // tile_n,)
        w_arg = w_lin.reshape(dim, 1)
        x_spec = pl.BlockSpec((dim, tile_n), lambda i: (0, i))
        w_spec = pl.BlockSpec((dim, 1), lambda i: (0, 0), pipeline_mode=pl.Buffered(1))
        out_spec = pl.BlockSpec((1, tile_n), lambda i: (0, i))
        out_shape = jax.ShapeDtypeStruct((1, N_pad), x.dtype)
        lin_kernel, quad_kernel = _linear_colmajor_kernel, _quadratic_colmajor_kernel
        vmem_est = (2 * dim * tile_n * itemsize    # x^T, double-buffered
                    + 2 * tile_n * itemsize        # out, double-buffered
                    + fixed_bytes)                 # M + w, single-buffered
    else:
        # dim >= 128: the natural (N, dim) layout is already lane-full, so the
        # kernel consumes x directly (saves a full HBM read+write of x).
        cap = max(8, (per_buf_budget // max(1, dim * itemsize)) // 8 * 8)
        tile_m = int(min(4096, cap)) if tile is None else int(tile)
        if tile is None and N >= 16 and _round_up(N, 8) <= tile_m:
            tile_m = _round_up((N + 1) // 2, 8)   # >= 2 steps for v7x megacore
        tile_m = max(8, min(tile_m, _round_up(N, 8)))
        assert tile_m % 8 == 0
        N_pad = _round_up(N, tile_m)
        x_arg = x if N_pad == N else jnp.pad(x, ((0, N_pad - N), (0, 0)))

        grid = (N_pad // tile_m,)
        w_arg = w_lin.reshape(1, dim)
        x_spec = pl.BlockSpec((tile_m, dim), lambda i: (i, 0))
        w_spec = pl.BlockSpec((1, dim), lambda i: (0, 0), pipeline_mode=pl.Buffered(1))
        out_spec = pl.BlockSpec((tile_m, 1), lambda i: (i, 0))
        out_shape = jax.ShapeDtypeStruct((N_pad, 1), x.dtype)
        lin_kernel, quad_kernel = _linear_rowmajor_kernel, _quadratic_rowmajor_kernel
        vmem_est = (2 * tile_m * dim * itemsize + 2 * tile_m * itemsize + fixed_bytes)

    b_spec = pl.BlockSpec(memory_space=pltpu.MemorySpace.SMEM)

    # Always set an honest VMEM limit (v5e default scoped VMEM is only 16 MiB),
    # capped generation-aware (~48 MiB on v7x, ~96 MiB on v5e/v6e).
    vmem_limit = int(min(vmem_cap, max(32 << 20, 2 * vmem_est + (4 << 20))))
    compiler_params = pltpu.CompilerParams(
        dimension_semantics=("parallel",),
        vmem_limit_bytes=vmem_limit)

    flops = (2 * dim * dim + 4 * dim) * N_pad if quadratic_features else 3 * dim * N_pad
    cost = pl.CostEstimate(
        flops=int(flops),
        transcendentals=int(N_pad),  # sigmoid exp
        bytes_accessed=int(dim * N_pad * itemsize + fixed_bytes + N_pad * itemsize))

    if quadratic_features:
        m_spec = pl.BlockSpec((dim, dim), lambda i: (0, 0), pipeline_mode=pl.Buffered(1))
        kernel = quad_kernel
        in_specs = [x_spec, m_spec, w_spec, b_spec]
        args = (x_arg, M, w_arg, b)
    else:
        kernel = lin_kernel
        in_specs = [x_spec, w_spec, b_spec]
        args = (x_arg, w_arg, b)

    out = pl.pallas_call(
        kernel,
        out_shape=out_shape,
        grid_spec=pltpu.PrefetchScalarGridSpec(
            num_scalar_prefetch=0,
            grid=grid,
            in_specs=in_specs,
            out_specs=out_spec),
        compiler_params=compiler_params,
        cost_estimate=cost,
    )(*args)

    if use_colmajor:
        return out[0, :N].reshape(N, 1)
    return out[:N]


# ---------------- pure-JAX reference reproducing PyTorch semantics ------------
def reference_forward(x, weight, bias, quadratic_features=False):
    if quadratic_features:
        d = x.shape[1]
        iu, ju = jnp.triu_indices(d, k=1)  # row-major (i, j>i) == PyTorch loop order
        x = jnp.concatenate([x, x[:, iu] * x[:, ju], x * x], axis=1)
    z = jnp.dot(x, weight.T, precision=jax.lax.Precision.HIGHEST) + bias
    return jax.nn.sigmoid(z)


def init_linear_params(key, in_features):
    """Deterministic nn.Linear-style init: U(-1/sqrt(in), 1/sqrt(in))."""
    kw, kb = jax.random.split(key)
    bound = 1.0 / math.sqrt(in_features)
    weight = jax.random.uniform(kw, (1, in_features), jnp.float32, -bound, bound)
    bias = jax.random.uniform(kb, (1,), jnp.float32, -bound, bound)
    return weight, bias


if __name__ == "__main__":
    key = jax.random.PRNGKey(0)
    n_classes = 2  # unused by LogisticModel.forward (Linear always has 1 output)
    kx1, kx2, kx3, kx4, kp1, kp2, kp3, kp4 = jax.random.split(key, 8)

    def n_features(d):
        return d + d * (d - 1) // 2 + d

    # 1) plain logistic, tiny batch (batch-on-lanes path)
    dim, N = 8, 16
    x = jax.random.normal(kx1, (N, dim), jnp.float32)
    w, b = init_linear_params(kp1, dim)
    out = jax.block_until_ready(logistic_forward(x, w, b, quadratic_features=False))
    ref = reference_forward(x, w, b, quadratic_features=False)
    assert out.shape == (N, 1)
    assert jnp.allclose(out, ref, atol=1e-5, rtol=1e-5)

    # 2) quadratic features, multi-step grid + batch padding (tile override)
    dim, N = 8, 300
    x = jax.random.normal(kx2, (N, dim), jnp.float32)
    w, b = init_linear_params(kp2, n_features(dim))
    out = jax.block_until_ready(
        logistic_forward(x, w, b, quadratic_features=True, tile=128))
    ref = reference_forward(x, w, b, quadratic_features=True)
    assert out.shape == (N, 1)
    assert jnp.allclose(out, ref, atol=1e-5, rtol=1e-5)

    # 3) dim >= 128: row-major path (no wrapper transpose), plain logistic
    dim, N = 128, 200
    x = jax.random.normal(kx3, (N, dim), jnp.float32)
    w, b = init_linear_params(kp3, dim)
    out = jax.block_until_ready(logistic_forward(x, w, b, quadratic_features=False))
    ref = reference_forward(x, w, b, quadratic_features=False)
    assert out.shape == (N, 1)
    assert jnp.allclose(out, ref, atol=1e-4, rtol=1e-4)

    # 4) dim >= 128: row-major path, quadratic features
    dim, N = 128, 256
    x = jax.random.normal(kx4, (N, dim), jnp.float32)
    w, b = init_linear_params(kp4, n_features(dim))
    out = jax.block_until_ready(logistic_forward(x, w, b, quadratic_features=True))
    ref = reference_forward(x, w, b, quadratic_features=True)
    assert out.shape == (N, 1)
    assert jnp.allclose(out, ref, atol=2e-3, rtol=2e-3)

    print("KERNEL_OK")
</pallas_src>

<mosaic_0001>
module attributes {stable_mosaic.version = 11 : i64} {
  func.func @_linear_colmajor_kernel(%arg0: i32, %arg1: memref<8x128xf32, #tpu.memory_space<vmem>>, %arg2: memref<8x1xf32, #tpu.memory_space<vmem>>, %arg3: memref<1xf32, #tpu.memory_space<smem>>, %arg4: memref<1x128xf32, #tpu.memory_space<vmem>>) attributes {dimension_semantics = [#tpu.dimension_semantics<parallel>], iteration_bounds = array<i64: 1>, scalar_prefetch = 0 : i64, scratch_operands = 0 : i64, tpu.core_type = #tpu.core_type<tc>, window_params = [{transform_indices = @transform_0, window_bounds = array<i64: 8, 128>}, {pipeline_mode = #tpu.pipeline_mode<synchronous>, transform_indices = @transform_1, window_bounds = array<i64: 8, 1>}, {transform_indices = @transform_2, window_bounds = array<i64: 1>}, {transform_indices = @transform_3, window_bounds = array<i64: 1, 128>}]} {
    %c0 = arith.constant 0 : index
    %c0_0 = arith.constant 0 : index
    %0 = vector.load %arg1[%c0, %c0_0] : memref<8x128xf32, #tpu.memory_space<vmem>>, vector<8x128xf32>
    %c0_1 = arith.constant 0 : index
    %c0_2 = arith.constant 0 : index
    %1 = vector.load %arg2[%c0_1, %c0_2] : memref<8x1xf32, #tpu.memory_space<vmem>>, vector<8x1xf32>
    %2 = vector.broadcast %1 : vector<8x1xf32> to vector<8x128xf32>
    %3 = arith.mulf %0, %2 : vector<8x128xf32>
    %cst = arith.constant dense<0.000000e+00> : vector<128xf32>
    %4 = vector.multi_reduction <add>, %3, %cst [0] : vector<8x128xf32> to vector<128xf32>
    %5 = vector.shape_cast %4 : vector<128xf32> to vector<1x128xf32>
    %c0_3 = arith.constant 0 : index
    %6 = memref.load %arg3[%c0_3] : memref<1xf32, #tpu.memory_space<smem>>
    %7 = vector.broadcast %6 : f32 to vector<1x128xf32>
    %8 = arith.addf %5, %7 : vector<1x128xf32>
    %9 = arith.negf %8 : vector<1x128xf32>
    %10 = math.exp %9 : vector<1x128xf32>
    %cst_4 = arith.constant 1.000000e+00 : f32
    %11 = vector.broadcast %cst_4 : f32 to vector<1x128xf32>
    %12 = arith.addf %11, %10 : vector<1x128xf32>
    %13 = arith.divf %11, %12 : vector<1x128xf32>
    %c0_5 = arith.constant 0 : index
    %c0_6 = arith.constant 0 : index
    %14 = vector.load %arg4[%c0_5, %c0_6] : memref<1x128xf32, #tpu.memory_space<vmem>>, vector<1x128xf32>
    tpu.vector_store %arg4[%c0_5, %c0_6], %13 {strides = array<i32>} : memref<1x128xf32, #tpu.memory_space<vmem>>, vector<1x128xf32>,
    return
  }
  func.func @transform_0(%arg0: i32) -> (i32, i32) {
    %c0_i32 = arith.constant 0 : i32
    %c0_i32_0 = arith.constant 0 : i32
    return %c0_i32, %arg0 : i32, i32
  }
  func.func @transform_1(%arg0: i32) -> (i32, i32) {
    %c0_i32 = arith.constant 0 : i32
    %c0_i32_0 = arith.constant 0 : i32
    %c0_i32_1 = arith.constant 0 : i32
    return %c0_i32, %c0_i32_0 : i32, i32
  }
  func.func @transform_2(%arg0: i32) -> i32 {
    %c0_i32 = arith.constant 0 : i32
    %c0_i32_0 = arith.constant 0 : i32
    return %c0_i32 : i32
  }
  func.func @transform_3(%arg0: i32) -> (i32, i32) {
    %c0_i32 = arith.constant 0 : i32
    %c0_i32_0 = arith.constant 0 : i32
    return %c0_i32, %arg0 : i32, i32
  }
}

</mosaic_0001>

<llo_original>
// kernel: tpu_custom_call.1
$region0: #{tpu_custom_call.1}
  #allocation0 [shape = 'u32[]', space=smem, size = 0x4, offset = 0x4, fixed_abs, tag = 'smem constant byte address 0x4 - core index']
  #allocation1 [shape = 'u32[144,128]{1,0:T(1,128)}', space=vmem, size = 0x12000, scoped, tag = 'internal scratch']
  #allocation2 [shape = 'f32[1]{0:T(128)S(6)}', space=smem, size = 0x200, scoped, tag = 'scoped memory for tpu_custom_call.1']
  %s0 = inlined_call_operand.vmem [shape: f32[8,128], index: 0, kind: input, shape index: {}]
  %s1 = inlined_call_operand.vmem [shape: f32[8,1], index: 1, kind: input, shape index: {}]
  %s2 = inlined_call_operand.<no memory space> [shape: f32[1], index: 2, kind: input, shape index: {}]
  %s3 = inlined_call_operand.hbm [shape: f32[1,128], index: 3, kind: output, shape index: {}]
  %s4 = sld [smem:[#allocation0]]
  $region22: #{tpu_custom_call.1} parent=0
    _
  %s6 = ssub.s32 1, %s4
  %s7 = scalar_select 0, %s6, %s4
  %8 = sst [smem:[#allocation2]] %s2
  $region1: #{tpu_custom_call.1} parent=0
    #allocation3 [shape = 'u8[512]{0}', space=vmem, size = 0x400, scoped, tag = 'output window, operand 0, single buffered']
    #allocation4 [shape = 's32[1]{0}', space=sflag, size = 0x4, scoped, tag = 'scoped memory for tpu_custom_call.1']
    %9 = vsyncpa [#allocation4], 0
    // Predicated region
    $region2: #{tpu_custom_call.1} parent=1 // pred_check
      _
    $region3: #{tpu_custom_call.1} parent=1 // pred_check_branch
      %11 = sbr.rel (0) target = $region5
    $region4: #{tpu_custom_call.1} parent=1 // pred_region
      _
    $region5: #{tpu_custom_call.1} parent=1 // pred_fallthru
      _
    // Predicated region
    $region6: #{tpu_custom_call.1} parent=1 // pred_check
      _
    $region7: #{tpu_custom_call.1} parent=1 // pred_check_branch
      %13 = sbr.rel (0) target = $region9
    $region8: #{tpu_custom_call.1} parent=1 // pred_region
      _
    $region9: #{tpu_custom_call.1} parent=1 // pred_fallthru
      _
    // Predicated region
    $region10: #{tpu_custom_call.1} parent=1 // pred_check
      _
    $region11: #{tpu_custom_call.1} parent=1 // pred_check_branch
      %15 = sbr.rel (0) target = $region13
    $region12: #{tpu_custom_call.1} parent=1 // pred_region
      _
    $region13: #{tpu_custom_call.1} parent=1 // pred_fallthru
      _
    %v16 = vld [vmem:[%s0] sm:$0xff]
    %v17 = vld [vmem:[%s1] sm:$0xff]
    %19 = vset.pattern.permute.xlu0 0
    %20 = vperm.xlu0 %19, %v17
    %v21 = vpop.permute.xlu0 %20
    %v23 = vmul.f32 %v16, %v21
    %v24 = vrot.slane %v23, 4
    %v25 = vadd.f32 %v23, %v24
    %v26 = vrot.slane %v25, 2
    %v27 = vadd.f32 %v25, %v26
    %v28 = vrot.slane %v27, 1
    %v29 = vadd.f32 %v27, %v28
    %s30 = sld [smem:[#allocation2]]
    %v31 = vstv %s30
    %v32 = vadd.f32 %v29, %v31
    %v33 = vxor.u32 %v32, 2147483648
    %v34 = vmul.f32 %v33, 1.442695
    %v35 = vpow.pop %v34
    %v36 = vadd.f32 %v35, 1.0
    %v37 = vrcp.pop %v36
    %v38 = vmul.f32 1.0, %v37
    %39 = vst [vmem:[#allocation3] sm:$0x1] %v38
    // Predicated region
    $region14: #{tpu_custom_call.1} parent=1 // pred_check
      _
    $region15: #{tpu_custom_call.1} parent=1 // pred_check_branch
      %41 = sbr.rel (0) target = $region17
    $region16: #{tpu_custom_call.1} parent=1 // pred_region
      %s43 = ssub.s32 16, 16
      %44 = vsyncadd [#allocation4], %s43
      %s46 = sshll.u32 [#allocation3], 4
      %s47 = int_to_ptr.vmem [resolvable:$true] %s46
      %49 = dma.vmem_to_hbm [thread:$0]  %s47, 16, %s3, [#allocation4]
    $region17: #{tpu_custom_call.1} parent=1 // pred_fallthru
      _
    // Predicated region
    $region18: #{tpu_custom_call.1} parent=1 // pred_check
      _
    $region19: #{tpu_custom_call.1} parent=1 // pred_check_branch
      %51 = sbr.rel (0) target = $region21
    $region20: #{tpu_custom_call.1} parent=1 // pred_region
      %52 = dma.done [#allocation4], 16
    $region21: #{tpu_custom_call.1} parent=1 // pred_fallthru
      _
    %53 = vsyncpa [#allocation4], 1

</llo_original>
